<compile_context>
chip_gen: v7x
topology: tpu7x:2x2x1
jax: 0.10.0
libtpu: 0.0.40
codegen_flags: <defaults>
</compile_context>

<pallas_src>
import functools

import jax
import jax.numpy as jnp
from jax.experimental import pallas as pl
from jax.experimental.pallas import tpu as pltpu

LANES = 128
MAX_ROW_TILE = 8192      # 8192 x 128 f32 = 4 MiB per input per buffer


@functools.lru_cache(maxsize=1)
def _num_tensorcores() -> int:
    """2 TensorCores per chip on v7x; 1 on v5e/v6e (a size-2 split there is
    just a serial loop with wasted DMA)."""
    try:
        kind = jax.devices()[0].device_kind.lower()
    except Exception:
        return 1
    return 2 if "v7" in kind else 1


def _sublane_multiple(dtype) -> int:
    # 8 for 4-byte dtypes, 16 for bf16/fp16, 32 for int8/fp8.
    return max(8, 32 // jnp.dtype(dtype).itemsize)


def _stable_bce_kernel(x_ref, t_ref, out_ref, acc_ref, *,
                       n_blocks, rem_rows, row_tile):
    i = pl.program_id(0)              # core split (parallel)
    j = pl.program_id(1)              # row-block within split (reduction)
    nb = pl.num_programs(1)

    @pl.when(j == 0)
    def _init():
        acc_ref[...] = jnp.zeros_like(acc_ref)

    logical_block = i * nb + j

    def block_loss():
        x = x_ref[...].astype(jnp.float32)
        t = t_ref[...].astype(jnp.float32)
        # clamp(x, min=0) - x*t + softplus(-|x|)   (numerically stable form)
        return jnp.maximum(x, 0.0) - x * t + jnp.log1p(jnp.exp(-jnp.abs(x)))

    def vreg_sum(v):
        # (row_tile, 128) -> (8, 128): sublane-preserving reshape, sum over
        # the major axis is pure VPU adds (no XLU, no acc ld/st per vreg).
        return v.reshape(row_tile // 8, 8, LANES).sum(axis=0)

    @pl.when(logical_block < n_blocks - 1)
    def _full_block():
        acc_ref[...] += vreg_sum(block_loss())

    @pl.when(logical_block == n_blocks - 1)
    def _tail_block():
        loss = block_loss()
        if rem_rows != row_tile:
            # rem_rows is a static Python int: mask with block-local row ids
            # only (no flat/global index arithmetic, no int32 overflow risk).
            # NOTE: keep this as a select (jnp.where), not a multiply-by-mask,
            # so garbage in the OOB rows cannot propagate NaN/Inf.
            row_ids = jax.lax.broadcasted_iota(jnp.int32, (row_tile, LANES), 0)
            loss = jnp.where(row_ids < rem_rows, loss, 0.0)
        acc_ref[...] += vreg_sum(loss)

    # logical_block > n_blocks - 1 (clamped block on the other core split when
    # n_blocks is not a multiple of the split): skipped entirely.

    @pl.when(j == nb - 1)
    def _finalize():
        out_ref[...] = jnp.sum(acc_ref[...], keepdims=True)


@jax.jit
def stable_bce_loss(input_, target):
    assert input_.shape == target.shape
    n_elems = input_.size
    assert n_elems > 0

    x = input_.reshape(-1)
    t = target.reshape(-1)

    def _loss_f32(xv, tv):
        xv = xv.astype(jnp.float32)
        tv = tv.astype(jnp.float32)
        return jnp.maximum(xv, 0.0) - xv * tv + jnp.log1p(jnp.exp(-jnp.abs(xv)))

    n_main = (n_elems // LANES) * LANES   # lane-aligned prefix -> kernel
    n_tail = n_elems - n_main             # <128-element ragged tail -> jnp

    total = jnp.float32(0.0)

    if n_main:
        rows = n_main // LANES
        # Common case (n_elems % 128 == 0): full slice + reshape are no-ops,
        # zero extra HBM traffic.  Ragged sizes slice only the aligned prefix
        # instead of pad-copying both full arrays.
        x2 = x[:n_main].reshape(rows, LANES)
        t2 = t[:n_main].reshape(rows, LANES)

        sub = max(_sublane_multiple(x2.dtype), _sublane_multiple(t2.dtype))

        def _round_up(a, b):
            return (a + b - 1) // b * b

        row_tile = min(_round_up(MAX_ROW_TILE, sub), _round_up(rows, sub))
        n_blocks = pl.cdiv(rows, row_tile)
        rem_rows = rows - (n_blocks - 1) * row_tile   # static tail remainder

        nsplit = _num_tensorcores()
        blocks_per_split = pl.cdiv(n_blocks, nsplit)
        grid = (nsplit, blocks_per_split)

        def in_map(i, j):
            # Clamp fully out-of-range logical blocks onto the last real
            # block; the kernel skips their contribution entirely.
            return (jnp.minimum(i * blocks_per_split + j, n_blocks - 1), 0)

        tile_spec = pl.BlockSpec((row_tile, LANES), in_map)

        kernel = functools.partial(
            _stable_bce_kernel,
            n_blocks=n_blocks, rem_rows=rem_rows, row_tile=row_tile)

        # Explicit scoped-VMEM budget: double-buffered input tiles + headroom
        # (the accumulator is only 4 KiB).  Stays under v7x's 64 MiB physical
        # and lifts v5e's 16 MiB scoped default when needed.
        buf_bytes = 2 * row_tile * LANES * (
            x2.dtype.itemsize + t2.dtype.itemsize)
        vmem_limit = int(min(48 * 1024 * 1024, buf_bytes + (4 << 20)))

        partials = pl.pallas_call(
            kernel,
            out_shape=jax.ShapeDtypeStruct((nsplit, 1), jnp.float32),
            grid_spec=pltpu.PrefetchScalarGridSpec(
                num_scalar_prefetch=0,
                grid=grid,
                in_specs=[tile_spec, tile_spec],
                out_specs=pl.BlockSpec((1, 1), lambda i, j: (i, 0)),
                scratch_shapes=[pltpu.VMEM((8, LANES), jnp.float32)],
            ),
            compiler_params=pltpu.CompilerParams(
                dimension_semantics=("parallel", "arbitrary"),
                vmem_limit_bytes=vmem_limit),
        )(x2, t2)

        total = total + jnp.sum(partials)

    if n_tail:
        total = total + jnp.sum(_loss_f32(x[n_main:], t[n_main:]))

    return (total / jnp.float32(n_elems)).astype(input_.dtype)


def _reference(input_, target):
    x = input_.astype(jnp.float32)
    t = target.astype(jnp.float32)
    loss = jnp.maximum(x, 0.0) - x * t + jnp.log1p(jnp.exp(-jnp.abs(x)))
    return loss.mean()


if __name__ == "__main__":
    key = jax.random.PRNGKey(0)
    k1, k2 = jax.random.split(key)

    # Small NCHW-shaped logits and {0,1} targets (StableBCELoss has no params).
    x = jax.random.normal(k1, (2, 4, 16, 16), dtype=jnp.float32) * 3.0
    t = jax.random.bernoulli(k2, 0.5, (2, 4, 16, 16)).astype(jnp.float32)

    out = stable_bce_loss(x, t)
    jax.block_until_ready(out)

    ref = _reference(x, t)
    assert jnp.allclose(out, ref, rtol=1e-5, atol=1e-5), (out, ref)
    print("KERNEL_OK")
</pallas_src>

<mosaic_0001>
module attributes {stable_mosaic.version = 11 : i64} {
  func.func @_stable_bce_kernel(%arg0: i32, %arg1: i32, %arg2: memref<16x128xf32, #tpu.memory_space<vmem>>, %arg3: memref<16x128xf32, #tpu.memory_space<vmem>>, %arg4: memref<1x1xf32, #tpu.memory_space<vmem>>, %arg5: memref<8x128xf32, #tpu.memory_space<vmem>>) attributes {dimension_semantics = [#tpu.dimension_semantics<parallel>, #tpu.dimension_semantics<arbitrary>], iteration_bounds = array<i64: 1, 1>, scalar_prefetch = 0 : i64, scratch_operands = 1 : i64, tpu.core_type = #tpu.core_type<tc>, window_params = [{transform_indices = @transform_0, window_bounds = array<i64: 16, 128>}, {transform_indices = @transform_1, window_bounds = array<i64: 16, 128>}, {transform_indices = @transform_2, window_bounds = array<i64: 1, 1>}]} {
    %c0_i32 = arith.constant 0 : i32
    %0 = arith.cmpi eq, %arg1, %c0_i32 : i32
    %1 = arith.extui %0 : i1 to i32
    %c0_i32_0 = arith.constant 0 : i32
    %2 = arith.cmpi ne, %1, %c0_i32_0 : i32
    scf.if %2 {
      %cst = arith.constant 0.000000e+00 : f32
      %14 = vector.broadcast %cst : f32 to vector<8x128xf32>
      %c0 = arith.constant 0 : index
      %c0_7 = arith.constant 0 : index
      %15 = vector.load %arg5[%c0, %c0_7] : memref<8x128xf32, #tpu.memory_space<vmem>>, vector<8x128xf32>
      tpu.vector_store %arg5[%c0, %c0_7], %14 {strides = array<i32>} : memref<8x128xf32, #tpu.memory_space<vmem>>, vector<8x128xf32>,
    } else {
    }
    %c1_i32 = arith.constant 1 : i32
    %3 = arith.muli %arg0, %c1_i32 : i32
    %4 = arith.addi %3, %arg1 : i32
    %c0_i32_1 = arith.constant 0 : i32
    %5 = arith.cmpi slt, %4, %c0_i32_1 : i32
    %6 = arith.extui %5 : i1 to i32
    %c0_i32_2 = arith.constant 0 : i32
    %7 = arith.cmpi ne, %6, %c0_i32_2 : i32
    scf.if %7 {
      %c0 = arith.constant 0 : index
      %c0_7 = arith.constant 0 : index
      %14 = vector.load %arg5[%c0, %c0_7] : memref<8x128xf32, #tpu.memory_space<vmem>>, vector<8x128xf32>
      %c0_8 = arith.constant 0 : index
      %c0_9 = arith.constant 0 : index
      %15 = vector.load %arg2[%c0_8, %c0_9] : memref<16x128xf32, #tpu.memory_space<vmem>>, vector<16x128xf32>
      %c0_10 = arith.constant 0 : index
      %c0_11 = arith.constant 0 : index
      %16 = vector.load %arg3[%c0_10, %c0_11] : memref<16x128xf32, #tpu.memory_space<vmem>>, vector<16x128xf32>
      %cst = arith.constant 0.000000e+00 : f32
      %17 = vector.broadcast %cst : f32 to vector<16x128xf32>
      %18 = arith.maximumf %15, %17 : vector<16x128xf32>
      %19 = arith.mulf %15, %16 : vector<16x128xf32>
      %20 = arith.subf %18, %19 : vector<16x128xf32>
      %21 = math.absf %15 : vector<16x128xf32>
      %cst_12 = arith.constant 0.000000e+00 : f32
      %22 = vector.broadcast %cst_12 : f32 to vector<16x128xf32>
      %23 = arith.subf %22, %21 : vector<16x128xf32>
      %24 = math.exp %23 : vector<16x128xf32>
      %25 = math.log1p %24 : vector<16x128xf32>
      %26 = arith.addf %20, %25 : vector<16x128xf32>
      %27 = vector.shape_cast %26 : vector<16x128xf32> to vector<2x8x128xf32>
      %cst_13 = arith.constant dense<0.000000e+00> : vector<8x128xf32>
      %28 = vector.multi_reduction <add>, %27, %cst_13 [0] : vector<2x8x128xf32> to vector<8x128xf32>
      %29 = arith.addf %14, %28 : vector<8x128xf32>
      %c0_14 = arith.constant 0 : index
      %c0_15 = arith.constant 0 : index
      %30 = vector.load %arg5[%c0_14, %c0_15] : memref<8x128xf32, #tpu.memory_space<vmem>>, vector<8x128xf32>
      tpu.vector_store %arg5[%c0_14, %c0_15], %29 {strides = array<i32>} : memref<8x128xf32, #tpu.memory_space<vmem>>, vector<8x128xf32>,
    } else {
    }
    %c0_i32_3 = arith.constant 0 : i32
    %8 = arith.cmpi eq, %4, %c0_i32_3 : i32
    %9 = arith.extui %8 : i1 to i32
    %c0_i32_4 = arith.constant 0 : i32
    %10 = arith.cmpi ne, %9, %c0_i32_4 : i32
    scf.if %10 {
      %c0 = arith.constant 0 : index
      %c0_7 = arith.constant 0 : index
      %14 = vector.load %arg2[%c0, %c0_7] : memref<16x128xf32, #tpu.memory_space<vmem>>, vector<16x128xf32>
      %c0_8 = arith.constant 0 : index
      %c0_9 = arith.constant 0 : index
      %15 = vector.load %arg3[%c0_8, %c0_9] : memref<16x128xf32, #tpu.memory_space<vmem>>, vector<16x128xf32>
      %cst = arith.constant 0.000000e+00 : f32
      %16 = vector.broadcast %cst : f32 to vector<16x128xf32>
      %17 = arith.maximumf %14, %16 : vector<16x128xf32>
      %18 = arith.mulf %14, %15 : vector<16x128xf32>
      %19 = arith.subf %17, %18 : vector<16x128xf32>
      %20 = math.absf %14 : vector<16x128xf32>
      %cst_10 = arith.constant 0.000000e+00 : f32
      %21 = vector.broadcast %cst_10 : f32 to vector<16x128xf32>
      %22 = arith.subf %21, %20 : vector<16x128xf32>
      %23 = math.exp %22 : vector<16x128xf32>
      %24 = math.log1p %23 : vector<16x128xf32>
      %25 = arith.addf %19, %24 : vector<16x128xf32>
      %c0_11 = arith.constant 0 : index
      %c0_12 = arith.constant 0 : index
      %26 = vector.load %arg5[%c0_11, %c0_12] : memref<8x128xf32, #tpu.memory_space<vmem>>, vector<8x128xf32>
      %27 = vector.shape_cast %25 : vector<16x128xf32> to vector<2x8x128xf32>
      %cst_13 = arith.constant dense<0.000000e+00> : vector<8x128xf32>
      %28 = vector.multi_reduction <add>, %27, %cst_13 [0] : vector<2x8x128xf32> to vector<8x128xf32>
      %29 = arith.addf %26, %28 : vector<8x128xf32>
      %c0_14 = arith.constant 0 : index
      %c0_15 = arith.constant 0 : index
      %30 = vector.load %arg5[%c0_14, %c0_15] : memref<8x128xf32, #tpu.memory_space<vmem>>, vector<8x128xf32>
      tpu.vector_store %arg5[%c0_14, %c0_15], %29 {strides = array<i32>} : memref<8x128xf32, #tpu.memory_space<vmem>>, vector<8x128xf32>,
    } else {
    }
    %c0_i32_5 = arith.constant 0 : i32
    %11 = arith.cmpi eq, %arg1, %c0_i32_5 : i32
    %12 = arith.extui %11 : i1 to i32
    %c0_i32_6 = arith.constant 0 : i32
    %13 = arith.cmpi ne, %12, %c0_i32_6 : i32
    scf.if %13 {
      %c0 = arith.constant 0 : index
      %c0_7 = arith.constant 0 : index
      %14 = vector.load %arg5[%c0, %c0_7] : memref<8x128xf32, #tpu.memory_space<vmem>>, vector<8x128xf32>
      %15 = vector.shape_cast %14 : vector<8x128xf32> to vector<1x8x128xf32>
      %cst = arith.constant dense<0.000000e+00> : vector<1xf32>
      %16 = vector.multi_reduction <add>, %15, %cst [1, 2] : vector<1x8x128xf32> to vector<1xf32>
      %17 = vector.shape_cast %16 : vector<1xf32> to vector<1x1x1xf32>
      %18 = vector.extract %17[0, 0, 0] : f32 from vector<1x1x1xf32>
      %19 = vector.broadcast %18 : f32 to vector<1x1xf32>
      %c0_8 = arith.constant 0 : index
      %c0_9 = arith.constant 0 : index
      %20 = vector.load %arg4[%c0_8, %c0_9] : memref<1x1xf32, #tpu.memory_space<vmem>>, vector<1x1xf32>
      tpu.vector_store %arg4[%c0_8, %c0_9], %19 {strides = array<i32>} : memref<1x1xf32, #tpu.memory_space<vmem>>, vector<1x1xf32>,
    } else {
    }
    return
  }
  func.func @transform_0(%arg0: i32, %arg1: i32) -> (i32, i32) {
    %c1_i32 = arith.constant 1 : i32
    %0 = arith.muli %arg0, %c1_i32 : i32
    %1 = arith.addi %0, %arg1 : i32
    %c0_i32 = arith.constant 0 : i32
    %2 = arith.minsi %1, %c0_i32 : i32
    %c0_i32_0 = arith.constant 0 : i32
    %c0_i32_1 = arith.constant 0 : i32
    return %2, %c0_i32_0 : i32, i32
  }
  func.func @transform_1(%arg0: i32, %arg1: i32) -> (i32, i32) {
    %c1_i32 = arith.constant 1 : i32
    %0 = arith.muli %arg0, %c1_i32 : i32
    %1 = arith.addi %0, %arg1 : i32
    %c0_i32 = arith.constant 0 : i32
    %2 = arith.minsi %1, %c0_i32 : i32
    %c0_i32_0 = arith.constant 0 : i32
    %c0_i32_1 = arith.constant 0 : i32
    return %2, %c0_i32_0 : i32, i32
  }
  func.func @transform_2(%arg0: i32, %arg1: i32) -> (i32, i32) {
    %c0_i32 = arith.constant 0 : i32
    %c0_i32_0 = arith.constant 0 : i32
    return %arg0, %c0_i32 : i32, i32
  }
}

</mosaic_0001>

<llo_original>
// kernel: stable_bce_loss.1
$region0: #{stable_bce_loss.1}
  #allocation0 [shape = 'u32[]', space=smem, size = 0x4, offset = 0x4, fixed_abs, tag = 'smem constant byte address 0x4 - core index']
  #allocation1 [shape = 'u32[144,128]{1,0:T(1,128)}', space=vmem, size = 0x12000, scoped, tag = 'internal scratch']
  #allocation2 [shape = 'f32[8,128]{1,0:T(8,128)}', space=vmem, size = 0x1000, scoped, tag = 'scratch operand']
  %s0 = inlined_call_operand.vmem [shape: f32[16,128], index: 0, kind: input, shape index: {}]
  %s1 = inlined_call_operand.vmem [shape: f32[16,128], index: 1, kind: input, shape index: {}]
  %s2 = inlined_call_operand.hbm [shape: f32[1,1], index: 2, kind: output, shape index: {}]
  %s3 = sld [smem:[#allocation0]]
  $region34: #{stable_bce_loss.1} parent=0
    _
  %s5 = ssub.s32 1, %s3
  %s6 = scalar_select 0, %s5, %s3
  $region1: #{stable_bce_loss.1} parent=0
    #allocation3 [shape = 'u8[512]{0}', space=vmem, size = 0x400, scoped, tag = 'output window, operand 0, single buffered']
    #allocation4 [shape = 's32[1]{0}', space=sflag, size = 0x4, scoped, tag = 'scoped memory for stable_bce_loss.1']
    %7 = vsyncpa [#allocation4], 0
    // Predicated region
    $region2: #{stable_bce_loss.1} parent=1 // pred_check
      _
    $region3: #{stable_bce_loss.1} parent=1 // pred_check_branch
      %9 = sbr.rel (0) target = $region5
    $region4: #{stable_bce_loss.1} parent=1 // pred_region
      %s10 = sadd.s32 0, 0
      %p11 = scmp.lt.s32.totalorder %s10, 0
      %s12 = scalar_select %p11, %s10, 0
      %s13 = smul.u32 2, %s12
      %p14 = scmp.lt.s32.totalorder %s13, 1
      %s15 = scalar_select %p14, %s13, 1
      %s16 = smul.addr %s15, 8
      %s17 = scalar_lea.vmem %s0, %s16
      %s18 = sadd.s32 0, 0
      %p19 = scmp.lt.s32.totalorder %s18, 0
      %s20 = scalar_select %p19, %s18, 0
      %s21 = smul.u32 2, %s20
    $region5: #{stable_bce_loss.1} parent=1 // pred_fallthru
      _
    // Predicated region
    $region6: #{stable_bce_loss.1} parent=1 // pred_check
      _
    $region7: #{stable_bce_loss.1} parent=1 // pred_check_branch
      %23 = sbr.rel (0) target = $region9
    $region8: #{stable_bce_loss.1} parent=1 // pred_region
      %s24 = sadd.s32 0, 0
      %p25 = scmp.lt.s32.totalorder %s24, 0
      %s26 = scalar_select %p25, %s24, 0
      %s27 = smul.u32 2, %s26
      %p28 = scmp.lt.s32.totalorder %s27, 1
      %s29 = scalar_select %p28, %s27, 1
      %s30 = smul.addr %s29, 8
      %s31 = scalar_lea.vmem %s1, %s30
      %s32 = sadd.s32 0, 0
      %p33 = scmp.lt.s32.totalorder %s32, 0
      %s34 = scalar_select %p33, %s32, 0
      %s35 = smul.u32 2, %s34
    $region9: #{stable_bce_loss.1} parent=1 // pred_fallthru
      _
    %s36 = sadd.s32 0, 0
    %p37 = scmp.lt.s32.totalorder %s36, 0
    %s38 = scalar_select %p37, %s36, 0
    %s39 = smul.u32 2, %s38
    %p40 = scmp.lt.s32.totalorder %s39, 1
    %s41 = scalar_select %p40, %s39, 1
    %s42 = smul.addr %s41, 8
    %s43 = scalar_lea.vmem %s0, %s42
    %s44 = sadd.s32 0, 0
    %p45 = scmp.lt.s32.totalorder %s44, 0
    %s46 = scalar_select %p45, %s44, 0
    %s47 = smul.u32 2, %s46
    %p48 = scmp.lt.s32.totalorder %s47, 1
    %s49 = scalar_select %p48, %s47, 1
    %s50 = smul.addr %s49, 8
    %s51 = scalar_lea.vmem %s1, %s50
    %s52 = sadd.s32 0, 0
    %p53 = scmp.lt.s32.totalorder %s52, 0
    %s54 = scalar_select %p53, %s52, 0
    %s55 = smul.u32 2, %s54
    %p56 = scmp.lt.s32.totalorder %s55, 1
    %s57 = scalar_select %p56, %s55, 1
    %s58 = smul.addr %s57, 8
    %s59 = scalar_lea.vmem %s0, %s58
    %s60 = sadd.s32 0, 0
    %p61 = scmp.lt.s32.totalorder %s60, 0
    %s62 = scalar_select %p61, %s60, 0
    %s63 = smul.u32 2, %s62
    %s64 = sadd.s32 0, 0
    %p65 = scmp.lt.s32.totalorder %s64, 0
    %s66 = scalar_select %p65, %s64, 0
    %s67 = smul.u32 2, %s66
    %p68 = scmp.lt.s32.totalorder %s67, 1
    %s69 = scalar_select %p68, %s67, 1
    %s70 = smul.addr %s69, 8
    %s71 = scalar_lea.vmem %s1, %s70
    %s72 = sadd.s32 0, 0
    %p73 = scmp.lt.s32.totalorder %s72, 0
    %s74 = scalar_select %p73, %s72, 0
    %s75 = smul.u32 2, %s74
    %p76 = scmp.eq.s32.totalorder 0, 0
    // Predicated region
    $region10: #{stable_bce_loss.1} parent=1 // pred_check
      %p77 = pneg %p76
    $region11: #{stable_bce_loss.1} parent=1 // pred_check_branch
      %79 = sbr.rel (%p77) target = $region13
    $region12: #{stable_bce_loss.1} parent=1 // pred_region
      %80 = vst [vmem:[#allocation2] sm:$0xff] 0.0
    $region13: #{stable_bce_loss.1} parent=1 // pred_fallthru
      _
    %s81 = sadd.s32 0, 0
    %p82 = scmp.lt.s32.totalorder %s81, 0
    // Predicated region
    $region14: #{stable_bce_loss.1} parent=1 // pred_check
      %p83 = pneg %p82
    $region15: #{stable_bce_loss.1} parent=1 // pred_check_branch
      %85 = sbr.rel (%p83) target = $region17
    $region16: #{stable_bce_loss.1} parent=1 // pred_region
      %v86 = vld [vmem:[#allocation2] sm:$0xff]
      %v87 = vld [vmem:[%s59] sm:$0xff]
      %v88 = vld [vmem:[%s59 + $0x8] sm:$0xff]
      %v89 = vld [vmem:[%s71] sm:$0xff]
      %v90 = vld [vmem:[%s71 + $0x8] sm:$0xff]
      %v91 = vmax.f32 %v87, 0.0
      %v92 = vmax.f32 %v88, 0.0
      %v93 = vmul.f32 %v87, %v89
      %v94 = vmul.f32 %v88, %v90
      %v95 = vsub.f32 %v91, %v93
      %v96 = vsub.f32 %v92, %v94
      %v97 = vand.u32 2147483647, %v87
      %v98 = vand.u32 2147483647, %v88
      %v99 = vsub.f32 0.0, %v97
      %v100 = vsub.f32 0.0, %v98
      %v101 = vmul.f32 %v99, 1.442695
      %v102 = vpow.pop %v101
      %v103 = vmul.f32 %v100, 1.442695
      %v104 = vpow.pop %v103
      %v105 = vadd.f32 %v102, 1.0
      %v106 = vlog2.pop %v105
      %v107 = vmul.f32 %v106, 0.6931472
      %v108 = vmul.f32 -0.5, %v102
      %v109 = vadd.f32 %v108, 1.0
      %v110 = vmul.f32 %v109, %v102
      %v111 = vand.u32 2147483647, %v102
      %vm112 = vcmp.lt.f32.partialorder %v111, 0.0004427343
      %v113 = vsel %vm112, %v110, %v107
      %v114 = vadd.f32 %v104, 1.0
      %v115 = vlog2.pop %v114
      %v116 = vmul.f32 %v115, 0.6931472
      %v117 = vmul.f32 -0.5, %v104
      %v118 = vadd.f32 %v117, 1.0
      %v119 = vmul.f32 %v118, %v104
      %v120 = vand.u32 2147483647, %v104
      %vm121 = vcmp.lt.f32.partialorder %v120, 0.0004427343
      %v122 = vsel %vm121, %v119, %v116
      %v123 = vadd.f32 %v95, %v113
      %v124 = vadd.f32 %v96, %v122
      %v125 = vadd.f32 %v123, %v124
      %v126 = vadd.f32 %v86, %v125
      %127 = vst [vmem:[#allocation2] sm:$0xff] %v126
    $region17: #{stable_bce_loss.1} parent=1 // pred_fallthru
      _
    %p128 = scmp.eq.s32.totalorder %s81, 0
    // Predicated region
    $region18: #{stable_bce_loss.1} parent=1 // pred_check
      %p129 = pneg %p128
    $region19: #{stable_bce_loss.1} parent=1 // pred_check_branch
      %131 = sbr.rel (%p129) target = $region21
    $region20: #{stable_bce_loss.1} parent=1 // pred_region
      %v132 = vld [vmem:[%s59] sm:$0xff]
      %v133 = vld [vmem:[%s59 + $0x8] sm:$0xff]
      %v134 = vld [vmem:[%s71] sm:$0xff]
      %v135 = vld [vmem:[%s71 + $0x8] sm:$0xff]
      %v136 = vmax.f32 %v132, 0.0
      %v137 = vmax.f32 %v133, 0.0
      %v138 = vmul.f32 %v132, %v134
      %v139 = vmul.f32 %v133, %v135
      %v140 = vsub.f32 %v136, %v138
      %v141 = vsub.f32 %v137, %v139
      %v142 = vand.u32 2147483647, %v132
      %v143 = vand.u32 2147483647, %v133
      %v144 = vsub.f32 0.0, %v142
      %v145 = vsub.f32 0.0, %v143
      %v146 = vmul.f32 %v144, 1.442695
      %v147 = vpow.pop %v146
      %v148 = vmul.f32 %v145, 1.442695
      %v149 = vpow.pop %v148
      %v150 = vadd.f32 %v147, 1.0
      %v151 = vlog2.pop %v150
      %v152 = vmul.f32 %v151, 0.6931472
      %v153 = vmul.f32 -0.5, %v147
      %v154 = vadd.f32 %v153, 1.0
      %v155 = vmul.f32 %v154, %v147
      %v156 = vand.u32 2147483647, %v147
      %vm157 = vcmp.lt.f32.partialorder %v156, 0.0004427343
      %v158 = vsel %vm157, %v155, %v152
      %v159 = vadd.f32 %v149, 1.0
      %v160 = vlog2.pop %v159
      %v161 = vmul.f32 %v160, 0.6931472
      %v162 = vmul.f32 -0.5, %v149
      %v163 = vadd.f32 %v162, 1.0
      %v164 = vmul.f32 %v163, %v149
      %v165 = vand.u32 2147483647, %v149
      %vm166 = vcmp.lt.f32.partialorder %v165, 0.0004427343
      %v167 = vsel %vm166, %v164, %v161
      %v168 = vadd.f32 %v140, %v158
      %v169 = vadd.f32 %v141, %v167
      %v170 = vld [vmem:[#allocation2] sm:$0xff]
      %v171 = vadd.f32 %v168, %v169
      %v172 = vadd.f32 %v170, %v171
      %173 = vst [vmem:[#allocation2] sm:$0xff] %v172
    $region21: #{stable_bce_loss.1} parent=1 // pred_fallthru
      _
    // Predicated region
    $region22: #{stable_bce_loss.1} parent=1 // pred_check
      %p174 = pneg %p76
    $region23: #{stable_bce_loss.1} parent=1 // pred_check_branch
      %176 = sbr.rel (%p174) target = $region25
    $region24: #{stable_bce_loss.1} parent=1 // pred_region
      %v177 = vld [vmem:[#allocation2] sm:$0xff]
      %178 = vadd.xlane.f32.xlu0 %v177
      %v179 = vpop.xlane.xlu0 %178
      %v180 = vrot.slane %v179, 4
      %v181 = vadd.f32 %v179, %v180
      %v182 = vrot.slane %v181, 2
      %v183 = vadd.f32 %v181, %v182
      %v184 = vrot.slane %v183, 1
      %v185 = vadd.f32 %v183, %v184
      %s186 = vtos %v185
      %v187 = vstv %s186
      %vm188 = vcmask 0
      %189 = vst.msk [vmem:[#allocation3] sm:$0x1] %vm188, %v187
    $region25: #{stable_bce_loss.1} parent=1 // pred_fallthru
      _
    // Predicated region
    $region26: #{stable_bce_loss.1} parent=1 // pred_check
      _
    $region27: #{stable_bce_loss.1} parent=1 // pred_check_branch
      %191 = sbr.rel (0) target = $region29
    $region28: #{stable_bce_loss.1} parent=1 // pred_region
      %s193 = ssub.s32 16, 16
      %194 = vsyncadd [#allocation4], %s193
      %s196 = sshll.u32 [#allocation3], 4
      %s197 = int_to_ptr.vmem [resolvable:$true] %s196
      %199 = dma.vmem_to_hbm [thread:$0]  %s197, 16, %s2, [#allocation4]
    $region29: #{stable_bce_loss.1} parent=1 // pred_fallthru
      _
    // Predicated region
    $region30: #{stable_bce_loss.1} parent=1 // pred_check
      _
    $region31: #{stable_bce_loss.1} parent=1 // pred_check_branch
      %201 = sbr.rel (0) target = $region33
    $region32: #{stable_bce_loss.1} parent=1 // pred_region
      %202 = dma.done [#allocation4], 16
    $region33: #{stable_bce_loss.1} parent=1 // pred_fallthru
      _
    %203 = vsyncpa [#allocation4], 1

</llo_original>
